<compile_context>
chip_gen: v5e
topology: v5e:2x2
jax: 0.10.0
libtpu: 0.0.40
codegen_flags: <defaults>
</compile_context>

<pallas_src>
import functools

import jax
import jax.numpy as jnp
from jax.experimental import pallas as pl
from jax.experimental.pallas import tpu as pltpu


def _round_up(v, m):
    return ((v + m - 1) // m) * m


def _fused_mlp_kernel(*refs):
    """refs = (x_ref, w0, b0, w1, b1, ..., w_{L-1}, b_{L-1}, o_ref).

    Computes relu(...relu(relu(x @ w0 + b0) @ w1 + b1)...) entirely in VMEM.
    The layer loop is a static Python loop (traced once); intermediate
    activations live in vregs/VMEM and never touch HBM.
    """
    x_ref = refs[0]
    o_ref = refs[-1]
    wb = refs[1:-1]
    n_layers = len(wb) // 2

    h = x_ref[...]
    for i in range(n_layers):
        w = wb[2 * i][...]
        b = wb[2 * i + 1][...]        # [1, N] broadcasts over rows
        h = jnp.maximum(
            jnp.dot(h, w, preferred_element_type=jnp.float32) + b, 0.0)
    o_ref[...] = h.astype(o_ref.dtype)


@functools.partial(jax.jit, static_argnames=("out_features", "m_tile"))
def cl_classifier_forward(x, padded_params, *, out_features, m_tile=256):
    """Forward pass of CL_classifier. Every Linear is followed by ReLU
    (encoder and classifier, including the final layer, as in the PyTorch
    module).

    x:              [batch, input_size] float32 (unpadded)
    padded_params:  tuple of (W_p [Kp, Np], b_p [1, Np]) already (8,128)-padded
    out_features:   true (unpadded) final output size
    """
    M, K = x.shape
    Kp0 = padded_params[0][0].shape[0]       # padded input width
    Np_last = padded_params[-1][0].shape[1]  # padded output width
    n_layers = len(padded_params)

    flat = []
    for w_p, b_p in padded_params:
        flat.extend((w_p, b_p))
    n_in = 1 + len(flat)

    # ---- batch padding / M tiling decision (all static) ----
    Mp = max(_round_up(M, 8), 8)
    if Mp > m_tile:
        Mp = _round_up(M, m_tile)
        n_m_tiles = Mp // m_tile
    else:
        n_m_tiles = 1

    # Pad the input once per forward (zero K-columns multiply zero W rows).
    x_p = jnp.zeros((Mp, Kp0), jnp.float32).at[:M, :K].set(x)

    # ---- VMEM budget: resident params + in/out activation slabs ----
    param_bytes = sum(int(a.size) * a.dtype.itemsize for a in flat)
    tile_rows = m_tile if n_m_tiles > 1 else Mp
    act_bytes = tile_rows * (Kp0 + Np_last) * 4
    vmem_limit = int(min(max(4 * (param_bytes + act_bytes), 8 << 20), 32 << 20))

    out_shape = jax.ShapeDtypeStruct((Mp, Np_last), jnp.float32)

    if n_m_tiles == 1:
        # Small batch: grid-less call, everything as full-array VMEM blocks.
        # No pipeline bookkeeping, no double buffering, single invocation.
        out = pl.pallas_call(
            _fused_mlp_kernel,
            out_shape=out_shape,
            in_specs=[pl.BlockSpec(memory_space=pltpu.MemorySpace.VMEM)] * n_in,
            out_specs=pl.BlockSpec(memory_space=pltpu.MemorySpace.VMEM),
            compiler_params=pltpu.CompilerParams(vmem_limit_bytes=vmem_limit),
        )(x_p, *flat)
    else:
        # Large batch: tile M over a "parallel" grid axis (sharded across the
        # two TensorCores on v7x); weights/biases stay resident at block 0.
        in_specs = [pl.BlockSpec((m_tile, Kp0), lambda i: (i, 0))]
        for w_p, b_p in padded_params:
            kin, nout = w_p.shape
            in_specs.append(pl.BlockSpec((kin, nout), lambda i: (0, 0)))
            in_specs.append(pl.BlockSpec((1, nout), lambda i: (0, 0)))
        out = pl.pallas_call(
            _fused_mlp_kernel,
            out_shape=out_shape,
            grid=(n_m_tiles,),
            in_specs=in_specs,
            out_specs=pl.BlockSpec((m_tile, Np_last), lambda i: (i, 0)),
            compiler_params=pltpu.CompilerParams(
                dimension_semantics=("parallel",),
                vmem_limit_bytes=vmem_limit),
        )(x_p, *flat)

    return out[:M, :out_features]


def init_params(key, input_size, encoder_sizes, classifier_sizes,
                final_output_size):
    """Deterministic Linear params (torch default-style uniform init).
    Each layer: (W [in, out], b [out]). Chain is
    input_size -> *encoder_sizes -> *classifier_sizes -> final_output_size,
    every layer followed by ReLU (matching the PyTorch module)."""
    dims = ([input_size] + list(encoder_sizes)
            + list(classifier_sizes) + [final_output_size])
    params = []
    for fan_in, fan_out in zip(dims[:-1], dims[1:]):
        key, kw, kb = jax.random.split(key, 3)
        bound = 1.0 / float(fan_in) ** 0.5
        w = jax.random.uniform(kw, (fan_in, fan_out), jnp.float32, -bound, bound)
        b = jax.random.uniform(kb, (fan_out,), jnp.float32, -bound, bound)
        params.append((w, b))
    return params


def pad_params(params):
    """Pad once at init: W -> [round_up(K,128), round_up(N,128)],
    b -> [1, round_up(N,128)]. Done exactly once, never in the hot path."""
    padded = []
    for w, b in params:
        K, N = w.shape
        Kp, Np = _round_up(K, 128), _round_up(N, 128)
        w_p = jnp.zeros((Kp, Np), jnp.float32).at[:K, :N].set(w)
        b_p = jnp.zeros((1, Np), jnp.float32).at[0, :N].set(b)
        padded.append((w_p, b_p))
    return tuple(padded)


def reference_forward(params, x):
    h = x
    for w, b in params:
        h = jnp.maximum(h @ w + b, 0.0)
    return h


# TODO(synk): load_partial_params (torch.load of a pretrained encoder) and the
# sole_classifier requires_grad freezing are host-side / training concerns with
# no Pallas equivalent; only the forward pass is implemented here.


if __name__ == "__main__":
    batch = 2
    input_size = 32
    encoder_sizes = [64, 32]
    classifier_sizes = [32, 16]
    final_output_size = 8

    key = jax.random.PRNGKey(0)
    key, kx = jax.random.split(key)
    x = jax.random.normal(kx, (batch, input_size), jnp.float32)

    params = init_params(key, input_size, encoder_sizes, classifier_sizes,
                         final_output_size)
    padded = pad_params(params)

    out = cl_classifier_forward(x, padded, out_features=final_output_size)
    out = jax.block_until_ready(out)

    ref = reference_forward(params, x)
    assert out.shape == (batch, final_output_size), out.shape
    assert jnp.allclose(out, ref, atol=1e-5, rtol=1e-5), (
        f"max abs err {jnp.max(jnp.abs(out - ref))}")

    print("KERNEL_OK")
</pallas_src>

<mosaic_0001>
module attributes {stable_mosaic.version = 11 : i64} {
  func.func @_fused_mlp_kernel(%arg0: memref<8x128xf32, #tpu.memory_space<vmem>>, %arg1: memref<128x128xf32, #tpu.memory_space<vmem>>, %arg2: memref<1x128xf32, #tpu.memory_space<vmem>>, %arg3: memref<128x128xf32, #tpu.memory_space<vmem>>, %arg4: memref<1x128xf32, #tpu.memory_space<vmem>>, %arg5: memref<128x128xf32, #tpu.memory_space<vmem>>, %arg6: memref<1x128xf32, #tpu.memory_space<vmem>>, %arg7: memref<128x128xf32, #tpu.memory_space<vmem>>, %arg8: memref<1x128xf32, #tpu.memory_space<vmem>>, %arg9: memref<128x128xf32, #tpu.memory_space<vmem>>, %arg10: memref<1x128xf32, #tpu.memory_space<vmem>>, %arg11: memref<8x128xf32, #tpu.memory_space<vmem>>) attributes {dimension_semantics = [], scalar_prefetch = 0 : i64, scratch_operands = 0 : i64, tpu.core_type = #tpu.core_type<tc>} {
    %c0 = arith.constant 0 : index
    %c0_0 = arith.constant 0 : index
    %0 = vector.load %arg0[%c0, %c0_0] : memref<8x128xf32, #tpu.memory_space<vmem>>, vector<8x128xf32>
    %c0_1 = arith.constant 0 : index
    %c0_2 = arith.constant 0 : index
    %1 = vector.load %arg1[%c0_1, %c0_2] : memref<128x128xf32, #tpu.memory_space<vmem>>, vector<128x128xf32>
    %c0_3 = arith.constant 0 : index
    %c0_4 = arith.constant 0 : index
    %2 = vector.load %arg2[%c0_3, %c0_4] : memref<1x128xf32, #tpu.memory_space<vmem>>, vector<1x128xf32>
    %cst = arith.constant dense<0.000000e+00> : vector<8x128xf32>
    %3 = tpu.matmul %0, %1, %cst {dimension_numbers = #tpu.dot_dimension_numbers<[1], [0], [0], [1], [0, 0, 1, 1], [], []>} : vector<8x128xf32>, vector<128x128xf32>, vector<8x128xf32> -> vector<8x128xf32>
    %4 = vector.broadcast %2 : vector<1x128xf32> to vector<8x128xf32>
    %5 = arith.addf %3, %4 : vector<8x128xf32>
    %cst_5 = arith.constant 0.000000e+00 : f32
    %6 = vector.broadcast %cst_5 : f32 to vector<8x128xf32>
    %7 = arith.maximumf %5, %6 : vector<8x128xf32>
    %c0_6 = arith.constant 0 : index
    %c0_7 = arith.constant 0 : index
    %8 = vector.load %arg3[%c0_6, %c0_7] : memref<128x128xf32, #tpu.memory_space<vmem>>, vector<128x128xf32>
    %c0_8 = arith.constant 0 : index
    %c0_9 = arith.constant 0 : index
    %9 = vector.load %arg4[%c0_8, %c0_9] : memref<1x128xf32, #tpu.memory_space<vmem>>, vector<1x128xf32>
    %cst_10 = arith.constant dense<0.000000e+00> : vector<8x128xf32>
    %10 = tpu.matmul %7, %8, %cst_10 {dimension_numbers = #tpu.dot_dimension_numbers<[1], [0], [0], [1], [0, 0, 1, 1], [], []>} : vector<8x128xf32>, vector<128x128xf32>, vector<8x128xf32> -> vector<8x128xf32>
    %11 = vector.broadcast %9 : vector<1x128xf32> to vector<8x128xf32>
    %12 = arith.addf %10, %11 : vector<8x128xf32>
    %cst_11 = arith.constant 0.000000e+00 : f32
    %13 = vector.broadcast %cst_11 : f32 to vector<8x128xf32>
    %14 = arith.maximumf %12, %13 : vector<8x128xf32>
    %c0_12 = arith.constant 0 : index
    %c0_13 = arith.constant 0 : index
    %15 = vector.load %arg5[%c0_12, %c0_13] : memref<128x128xf32, #tpu.memory_space<vmem>>, vector<128x128xf32>
    %c0_14 = arith.constant 0 : index
    %c0_15 = arith.constant 0 : index
    %16 = vector.load %arg6[%c0_14, %c0_15] : memref<1x128xf32, #tpu.memory_space<vmem>>, vector<1x128xf32>
    %cst_16 = arith.constant dense<0.000000e+00> : vector<8x128xf32>
    %17 = tpu.matmul %14, %15, %cst_16 {dimension_numbers = #tpu.dot_dimension_numbers<[1], [0], [0], [1], [0, 0, 1, 1], [], []>} : vector<8x128xf32>, vector<128x128xf32>, vector<8x128xf32> -> vector<8x128xf32>
    %18 = vector.broadcast %16 : vector<1x128xf32> to vector<8x128xf32>
    %19 = arith.addf %17, %18 : vector<8x128xf32>
    %cst_17 = arith.constant 0.000000e+00 : f32
    %20 = vector.broadcast %cst_17 : f32 to vector<8x128xf32>
    %21 = arith.maximumf %19, %20 : vector<8x128xf32>
    %c0_18 = arith.constant 0 : index
    %c0_19 = arith.constant 0 : index
    %22 = vector.load %arg7[%c0_18, %c0_19] : memref<128x128xf32, #tpu.memory_space<vmem>>, vector<128x128xf32>
    %c0_20 = arith.constant 0 : index
    %c0_21 = arith.constant 0 : index
    %23 = vector.load %arg8[%c0_20, %c0_21] : memref<1x128xf32, #tpu.memory_space<vmem>>, vector<1x128xf32>
    %cst_22 = arith.constant dense<0.000000e+00> : vector<8x128xf32>
    %24 = tpu.matmul %21, %22, %cst_22 {dimension_numbers = #tpu.dot_dimension_numbers<[1], [0], [0], [1], [0, 0, 1, 1], [], []>} : vector<8x128xf32>, vector<128x128xf32>, vector<8x128xf32> -> vector<8x128xf32>
    %25 = vector.broadcast %23 : vector<1x128xf32> to vector<8x128xf32>
    %26 = arith.addf %24, %25 : vector<8x128xf32>
    %cst_23 = arith.constant 0.000000e+00 : f32
    %27 = vector.broadcast %cst_23 : f32 to vector<8x128xf32>
    %28 = arith.maximumf %26, %27 : vector<8x128xf32>
    %c0_24 = arith.constant 0 : index
    %c0_25 = arith.constant 0 : index
    %29 = vector.load %arg9[%c0_24, %c0_25] : memref<128x128xf32, #tpu.memory_space<vmem>>, vector<128x128xf32>
    %c0_26 = arith.constant 0 : index
    %c0_27 = arith.constant 0 : index
    %30 = vector.load %arg10[%c0_26, %c0_27] : memref<1x128xf32, #tpu.memory_space<vmem>>, vector<1x128xf32>
    %cst_28 = arith.constant dense<0.000000e+00> : vector<8x128xf32>
    %31 = tpu.matmul %28, %29, %cst_28 {dimension_numbers = #tpu.dot_dimension_numbers<[1], [0], [0], [1], [0, 0, 1, 1], [], []>} : vector<8x128xf32>, vector<128x128xf32>, vector<8x128xf32> -> vector<8x128xf32>
    %32 = vector.broadcast %30 : vector<1x128xf32> to vector<8x128xf32>
    %33 = arith.addf %31, %32 : vector<8x128xf32>
    %cst_29 = arith.constant 0.000000e+00 : f32
    %34 = vector.broadcast %cst_29 : f32 to vector<8x128xf32>
    %35 = arith.maximumf %33, %34 : vector<8x128xf32>
    %c0_30 = arith.constant 0 : index
    %c0_31 = arith.constant 0 : index
    %36 = vector.load %arg11[%c0_30, %c0_31] : memref<8x128xf32, #tpu.memory_space<vmem>>, vector<8x128xf32>
    tpu.vector_store %arg11[%c0_30, %c0_31], %35 {strides = array<i32>} : memref<8x128xf32, #tpu.memory_space<vmem>>, vector<8x128xf32>,
    return
  }
}

</mosaic_0001>

<llo_original>
// kernel: cl_classifier_forward.1
$region0: #{cl_classifier_forward.1}
  #allocation0 [shape = 'u32[]', space=smem, size = 0x4, offset = 0x4, fixed_abs, tag = 'smem constant byte address 0x4 - core index']
  #allocation1 [shape = 'u32[72,128]{1,0:T(1,128)}', space=vmem, size = 0x9000, scoped, tag = 'internal scratch']
  %s0 = inlined_call_operand.vmem [shape: f32[8,128], index: 0, kind: input, shape index: {}]
  %s1 = inlined_call_operand.hbm [shape: f32[128,128], index: 1, kind: input, shape index: {}]
  %s2 = inlined_call_operand.vmem [shape: f32[1,128], index: 2, kind: input, shape index: {}]
  %s3 = inlined_call_operand.hbm [shape: f32[128,128], index: 3, kind: input, shape index: {}]
  %s4 = inlined_call_operand.vmem [shape: f32[1,128], index: 4, kind: input, shape index: {}]
  %s5 = inlined_call_operand.hbm [shape: f32[128,128], index: 5, kind: input, shape index: {}]
  %s6 = inlined_call_operand.vmem [shape: f32[1,128], index: 6, kind: input, shape index: {}]
  %s7 = inlined_call_operand.hbm [shape: f32[128,128], index: 7, kind: input, shape index: {}]
  %s8 = inlined_call_operand.vmem [shape: f32[1,128], index: 8, kind: input, shape index: {}]
  %s9 = inlined_call_operand.hbm [shape: f32[128,128], index: 9, kind: input, shape index: {}]
  %s10 = inlined_call_operand.vmem [shape: f32[1,128], index: 10, kind: input, shape index: {}]
  %s11 = inlined_call_operand.vmem [shape: f32[8,128], index: 11, kind: output, shape index: {}]
  %s12 = sld [smem:[#allocation0]]
  $region74: #{cl_classifier_forward.1} parent=0
    _
  %s14 = ssub.s32 1, %s12
  %s15 = scalar_select 0, %s14, %s12
  $region1: #{cl_classifier_forward.1} parent=0
    #allocation2 [shape = 'u8[65536]{0}', space=vmem, size = 0x10000, scoped, tag = 'input window, operand 1, single buffered']
    #allocation3 [shape = 's32[1]{0}', space=sflag, size = 0x4, scoped, tag = 'scoped memory for cl_classifier_forward.1']
    #allocation4 [shape = 'u8[65536]{0}', space=vmem, size = 0x10000, scoped, tag = 'input window, operand 3, single buffered']
    #allocation5 [shape = 's32[1]{0}', space=sflag, size = 0x4, scoped, tag = 'scoped memory for cl_classifier_forward.1']
    #allocation6 [shape = 'u8[65536]{0}', space=vmem, size = 0x10000, scoped, tag = 'input window, operand 5, single buffered']
    #allocation7 [shape = 'u8[65536]{0}', space=vmem, size = 0x10000, scoped, tag = 'input window, operand 7, single buffered']
    #allocation8 [shape = 's32[1]{0}', space=sflag, size = 0x4, scoped, tag = 'scoped memory for cl_classifier_forward.1']
    #allocation9 [shape = 'u8[65536]{0}', space=vmem, size = 0x10000, scoped, tag = 'input window, operand 9, single buffered']
    %16 = vsyncpa [#allocation3], 0
    %17 = vsyncpa [#allocation5], 0
    %18 = vsyncpa [#allocation8], 0
    // Predicated region
    $region2: #{cl_classifier_forward.1} parent=1 // pred_check
      _
    $region3: #{cl_classifier_forward.1} parent=1 // pred_check_branch
      %20 = sbr.rel (0) target = $region5
    $region4: #{cl_classifier_forward.1} parent=1 // pred_region
      _
    $region5: #{cl_classifier_forward.1} parent=1 // pred_fallthru
      _
    // Predicated region
    $region6: #{cl_classifier_forward.1} parent=1 // pred_check
      _
    $region7: #{cl_classifier_forward.1} parent=1 // pred_check_branch
      %22 = sbr.rel (0) target = $region9
    $region8: #{cl_classifier_forward.1} parent=1 // pred_region
      %24 = vsyncadd [#allocation3], 0
      %s25 = sshll.u32 %s1, 4
      %s26 = int_to_ptr.hbm [resolvable:$true] %s25
      %s27 = sshll.u32 [#allocation2], 4
      %s28 = int_to_ptr.vmem [resolvable:$true] %s27
      %33 = dma.hbm_to_vmem [thread:$0]  %s26, 2048, %s28, [#allocation3], 128, 128, 8
    $region9: #{cl_classifier_forward.1} parent=1 // pred_fallthru
      _
    // Predicated region
    $region10: #{cl_classifier_forward.1} parent=1 // pred_check
      _
    $region11: #{cl_classifier_forward.1} parent=1 // pred_check_branch
      %35 = sbr.rel (0) target = $region13
    $region12: #{cl_classifier_forward.1} parent=1 // pred_region
      _
    $region13: #{cl_classifier_forward.1} parent=1 // pred_fallthru
      _
    // Predicated region
    $region14: #{cl_classifier_forward.1} parent=1 // pred_check
      _
    $region15: #{cl_classifier_forward.1} parent=1 // pred_check_branch
      %37 = sbr.rel (0) target = $region17
    $region16: #{cl_classifier_forward.1} parent=1 // pred_region
      %39 = vsyncadd [#allocation5], 0
      %s40 = sshll.u32 %s3, 4
      %s41 = int_to_ptr.hbm [resolvable:$true] %s40
      %s42 = sshll.u32 [#allocation4], 4
      %s43 = int_to_ptr.vmem [resolvable:$true] %s42
      %48 = dma.hbm_to_vmem [thread:$0]  %s41, 2048, %s43, [#allocation5], 128, 128, 8
    $region17: #{cl_classifier_forward.1} parent=1 // pred_fallthru
      _
    // Predicated region
    $region18: #{cl_classifier_forward.1} parent=1 // pred_check
      _
    $region19: #{cl_classifier_forward.1} parent=1 // pred_check_branch
      %50 = sbr.rel (0) target = $region21
    $region20: #{cl_classifier_forward.1} parent=1 // pred_region
      _
    $region21: #{cl_classifier_forward.1} parent=1 // pred_fallthru
      _
    // Predicated region
    $region22: #{cl_classifier_forward.1} parent=1 // pred_check
      _
    $region23: #{cl_classifier_forward.1} parent=1 // pred_check_branch
      %52 = sbr.rel (0) target = $region25
    $region24: #{cl_classifier_forward.1} parent=1 // pred_region
      %54 = vsyncadd [#allocation5], 0
      %s55 = sshll.u32 %s5, 4
      %s56 = int_to_ptr.hbm [resolvable:$true] %s55
      %s57 = sshll.u32 [#allocation6], 4
      %s58 = int_to_ptr.vmem [resolvable:$true] %s57
      %63 = dma.hbm_to_vmem [thread:$0]  %s56, 2048, %s58, [#allocation5], 128, 128, 8
    $region25: #{cl_classifier_forward.1} parent=1 // pred_fallthru
      _
    // Predicated region
    $region26: #{cl_classifier_forward.1} parent=1 // pred_check
      _
    $region27: #{cl_classifier_forward.1} parent=1 // pred_check_branch
      %65 = sbr.rel (0) target = $region29
    $region28: #{cl_classifier_forward.1} parent=1 // pred_region
      _
    $region29: #{cl_classifier_forward.1} parent=1 // pred_fallthru
      _
    // Predicated region
    $region30: #{cl_classifier_forward.1} parent=1 // pred_check
      _
    $region31: #{cl_classifier_forward.1} parent=1 // pred_check_branch
      %67 = sbr.rel (0) target = $region33
    $region32: #{cl_classifier_forward.1} parent=1 // pred_region
      %69 = vsyncadd [#allocation8], 0
      %s70 = sshll.u32 %s7, 4
      %s71 = int_to_ptr.hbm [resolvable:$true] %s70
      %s72 = sshll.u32 [#allocation7], 4
      %s73 = int_to_ptr.vmem [resolvable:$true] %s72
      %78 = dma.hbm_to_vmem [thread:$0]  %s71, 2048, %s73, [#allocation8], 128, 128, 8
    $region33: #{cl_classifier_forward.1} parent=1 // pred_fallthru
      _
    // Predicated region
    $region34: #{cl_classifier_forward.1} parent=1 // pred_check
      _
    $region35: #{cl_classifier_forward.1} parent=1 // pred_check_branch
      %80 = sbr.rel (0) target = $region37
    $region36: #{cl_classifier_forward.1} parent=1 // pred_region
      _
    $region37: #{cl_classifier_forward.1} parent=1 // pred_fallthru
      _
    // Predicated region
    $region38: #{cl_classifier_forward.1} parent=1 // pred_check
      _
    $region39: #{cl_classifier_forward.1} parent=1 // pred_check_branch
      %82 = sbr.rel (0) target = $region41
    $region40: #{cl_classifier_forward.1} parent=1 // pred_region
      %84 = vsyncadd [#allocation8], 0
      %s85 = sshll.u32 %s9, 4
      %s86 = int_to_ptr.hbm [resolvable:$true] %s85
      %s87 = sshll.u32 [#allocation9], 4
      %s88 = int_to_ptr.vmem [resolvable:$true] %s87
      %93 = dma.hbm_to_vmem [thread:$0]  %s86, 2048, %s88, [#allocation8], 128, 128, 8
    $region41: #{cl_classifier_forward.1} parent=1 // pred_fallthru
      _
    // Predicated region
    $region42: #{cl_classifier_forward.1} parent=1 // pred_check
      _
    $region43: #{cl_classifier_forward.1} parent=1 // pred_check_branch
      %95 = sbr.rel (0) target = $region45
    $region44: #{cl_classifier_forward.1} parent=1 // pred_region
      _
    $region45: #{cl_classifier_forward.1} parent=1 // pred_fallthru
      _
    // Predicated region
    $region46: #{cl_classifier_forward.1} parent=1 // pred_check
      _
    $region47: #{cl_classifier_forward.1} parent=1 // pred_check_branch
      %97 = sbr.rel (0) target = $region49
    $region48: #{cl_classifier_forward.1} parent=1 // pred_region
      %99 = dma.done [#allocation3], 2048
    $region49: #{cl_classifier_forward.1} parent=1 // pred_fallthru
      _
    // Predicated region
    $region50: #{cl_classifier_forward.1} parent=1 // pred_check
      _
    $region51: #{cl_classifier_forward.1} parent=1 // pred_check_branch
      %101 = sbr.rel (0) target = $region53
    $region52: #{cl_classifier_forward.1} parent=1 // pred_region
      %103 = dma.done [#allocation5], 2048
    $region53: #{cl_classifier_forward.1} parent=1 // pred_fallthru
      _
    // Predicated region
    $region54: #{cl_classifier_forward.1} parent=1 // pred_check
      _
    $region55: #{cl_classifier_forward.1} parent=1 // pred_check_branch
      %105 = sbr.rel (0) target = $region57
    $region56: #{cl_classifier_forward.1} parent=1 // pred_region
      %107 = dma.done [#allocation5], 2048
    $region57: #{cl_classifier_forward.1} parent=1 // pred_fallthru
      _
    // Predicated region
    $region58: #{cl_classifier_forward.1} parent=1 // pred_check
      _
    $region59: #{cl_classifier_forward.1} parent=1 // pred_check_branch
      %109 = sbr.rel (0) target = $region61
    $region60: #{cl_classifier_forward.1} parent=1 // pred_region
      %111 = dma.done [#allocation8], 2048
    $region61: #{cl_classifier_forward.1} parent=1 // pred_fallthru
      _
    // Predicated region
    $region62: #{cl_classifier_forward.1} parent=1 // pred_check
      _
    $region63: #{cl_classifier_forward.1} parent=1 // pred_check_branch
      %113 = sbr.rel (0) target = $region65
    $region64: #{cl_classifier_forward.1} parent=1 // pred_region
      %115 = dma.done [#allocation8], 2048
    $region65: #{cl_classifier_forward.1} parent=1 // pred_fallthru
      _
    %v116 = vld [vmem:[%s0] sm:$0xff]
    %v117 = vld [vmem:[#allocation2] sm:$0xff]
    %v118 = vld [vmem:[#allocation2 + $0x8] sm:$0xff]
    %v119 = vld [vmem:[#allocation2 + $0x10] sm:$0xff]
    %v120 = vld [vmem:[#allocation2 + $0x18] sm:$0xff]
    %v121 = vld [vmem:[#allocation2 + $0x20] sm:$0xff]
    %v122 = vld [vmem:[#allocation2 + $0x28] sm:$0xff]
    %v123 = vld [vmem:[#allocation2 + $0x30] sm:$0xff]
    %v124 = vld [vmem:[#allocation2 + $0x38] sm:$0xff]
    %v125 = vld [vmem:[#allocation2 + $0x40] sm:$0xff]
    %v126 = vld [vmem:[#allocation2 + $0x48] sm:$0xff]
    %v127 = vld [vmem:[#allocation2 + $0x50] sm:$0xff]
    %v128 = vld [vmem:[#allocation2 + $0x58] sm:$0xff]
    %v129 = vld [vmem:[#allocation2 + $0x60] sm:$0xff]
    %v130 = vld [vmem:[#allocation2 + $0x68] sm:$0xff]
    %v131 = vld [vmem:[#allocation2 + $0x70] sm:$0xff]
    %v132 = vld [vmem:[#allocation2 + $0x78] sm:$0xff]
    %v133 = vld [vmem:[%s2] sm:$0x1]
    %v135 = vperm.slane %v133, 0
    %137 = vmatpush.msra.mxu0 %v132
    %138 = vmatpush.msra.mxu0 %v131
    %139 = vmatpush.msra.mxu0 %v130
    %140 = vmatpush.msra.mxu0 %v129
    %141 = vmatpush.msra.mxu0 %v128
    %142 = vmatpush.msra.mxu0 %v127
    %143 = vmatpush.msra.mxu0 %v126
    %144 = vmatpush.msra.mxu0 %v125
    %145 = vmatpush.msra.mxu0 %v124
    %146 = vmatpush.msra.mxu0 %v123
    %147 = vmatpush.msra.mxu0 %v122
    %148 = vmatpush.msra.mxu0 %v121
    %149 = vmatpush.msra.mxu0 %v120
    %150 = vmatpush.msra.mxu0 %v119
    %151 = vmatpush.msra.mxu0 %v118
    %152 = vmatpush.msra.mxu0 %v117
    %153 = vmatmul.f32.gmra.mxu0 %v116
    %v154 = vpop.f32.mrf.mxu0
    %v155 = vadd.f32 %v135, %v154
    %156 = vdwg.mxu0
    %v157 = vmax.f32 %v155, 0.0
    %v158 = vld [vmem:[#allocation4] sm:$0xff]
    %v159 = vld [vmem:[#allocation4 + $0x8] sm:$0xff]
    %v160 = vld [vmem:[#allocation4 + $0x10] sm:$0xff]
    %v161 = vld [vmem:[#allocation4 + $0x18] sm:$0xff]
    %v162 = vld [vmem:[#allocation4 + $0x20] sm:$0xff]
    %v163 = vld [vmem:[#allocation4 + $0x28] sm:$0xff]
    %v164 = vld [vmem:[#allocation4 + $0x30] sm:$0xff]
    %v165 = vld [vmem:[#allocation4 + $0x38] sm:$0xff]
    %v166 = vld [vmem:[#allocation4 + $0x40] sm:$0xff]
    %v167 = vld [vmem:[#allocation4 + $0x48] sm:$0xff]
    %v168 = vld [vmem:[#allocation4 + $0x50] sm:$0xff]
    %v169 = vld [vmem:[#allocation4 + $0x58] sm:$0xff]
    %v170 = vld [vmem:[#allocation4 + $0x60] sm:$0xff]
    %v171 = vld [vmem:[#allocation4 + $0x68] sm:$0xff]
    %v172 = vld [vmem:[#allocation4 + $0x70] sm:$0xff]
    %v173 = vld [vmem:[#allocation4 + $0x78] sm:$0xff]
    %v174 = vld [vmem:[%s4] sm:$0x1]
    %v176 = vperm.slane %v174, 0
    %178 = vmatpush.msra.mxu0 %v173
    %179 = vmatpush.msra.mxu0 %v172
    %180 = vmatpush.msra.mxu0 %v171
    %181 = vmatpush.msra.mxu0 %v170
    %182 = vmatpush.msra.mxu0 %v169
    %183 = vmatpush.msra.mxu0 %v168
    %184 = vmatpush.msra.mxu0 %v167
    %185 = vmatpush.msra.mxu0 %v166
    %186 = vmatpush.msra.mxu0 %v165
    %187 = vmatpush.msra.mxu0 %v164
    %188 = vmatpush.msra.mxu0 %v163
    %189 = vmatpush.msra.mxu0 %v162
    %190 = vmatpush.msra.mxu0 %v161
    %191 = vmatpush.msra.mxu0 %v160
    %192 = vmatpush.msra.mxu0 %v159
    %193 = vmatpush.msra.mxu0 %v158
    %194 = vmatmul.f32.gmra.mxu0 %v157
    %v195 = vpop.f32.mrf.mxu0
    %v196 = vadd.f32 %v176, %v195
    %197 = vdwg.mxu0
    %v198 = vmax.f32 %v196, 0.0
    %v199 = vld [vmem:[#allocation6] sm:$0xff]
    %v200 = vld [vmem:[#allocation6 + $0x8] sm:$0xff]
    %v201 = vld [vmem:[#allocation6 + $0x10] sm:$0xff]
    %v202 = vld [vmem:[#allocation6 + $0x18] sm:$0xff]
    %v203 = vld [vmem:[#allocation6 + $0x20] sm:$0xff]
    %v204 = vld [vmem:[#allocation6 + $0x28] sm:$0xff]
    %v205 = vld [vmem:[#allocation6 + $0x30] sm:$0xff]
    %v206 = vld [vmem:[#allocation6 + $0x38] sm:$0xff]
    %v207 = vld [vmem:[#allocation6 + $0x40] sm:$0xff]
    %v208 = vld [vmem:[#allocation6 + $0x48] sm:$0xff]
    %v209 = vld [vmem:[#allocation6 + $0x50] sm:$0xff]
    %v210 = vld [vmem:[#allocation6 + $0x58] sm:$0xff]
    %v211 = vld [vmem:[#allocation6 + $0x60] sm:$0xff]
    %v212 = vld [vmem:[#allocation6 + $0x68] sm:$0xff]
    %v213 = vld [vmem:[#allocation6 + $0x70] sm:$0xff]
    %v214 = vld [vmem:[#allocation6 + $0x78] sm:$0xff]
    %v215 = vld [vmem:[%s6] sm:$0x1]
    %v217 = vperm.slane %v215, 0
    %219 = vmatpush.msra.mxu0 %v214
    %220 = vmatpush.msra.mxu0 %v213
    %221 = vmatpush.msra.mxu0 %v212
    %222 = vmatpush.msra.mxu0 %v211
    %223 = vmatpush.msra.mxu0 %v210
    %224 = vmatpush.msra.mxu0 %v209
    %225 = vmatpush.msra.mxu0 %v208
    %226 = vmatpush.msra.mxu0 %v207
    %227 = vmatpush.msra.mxu0 %v206
    %228 = vmatpush.msra.mxu0 %v205
    %229 = vmatpush.msra.mxu0 %v204
    %230 = vmatpush.msra.mxu0 %v203
    %231 = vmatpush.msra.mxu0 %v202
    %232 = vmatpush.msra.mxu0 %v201
    %233 = vmatpush.msra.mxu0 %v200
    %234 = vmatpush.msra.mxu0 %v199
    %235 = vmatmul.f32.gmra.mxu0 %v198
    %v236 = vpop.f32.mrf.mxu0
    %v237 = vadd.f32 %v217, %v236
    %238 = vdwg.mxu0
    %v239 = vmax.f32 %v237, 0.0
    %v240 = vld [vmem:[#allocation7] sm:$0xff]
    %v241 = vld [vmem:[#allocation7 + $0x8] sm:$0xff]
    %v242 = vld [vmem:[#allocation7 + $0x10] sm:$0xff]
    %v243 = vld [vmem:[#allocation7 + $0x18] sm:$0xff]
    %v244 = vld [vmem:[#allocation7 + $0x20] sm:$0xff]
    %v245 = vld [vmem:[#allocation7 + $0x28] sm:$0xff]
    %v246 = vld [vmem:[#allocation7 + $0x30] sm:$0xff]
    %v247 = vld [vmem:[#allocation7 + $0x38] sm:$0xff]
    %v248 = vld [vmem:[#allocation7 + $0x40] sm:$0xff]
    %v249 = vld [vmem:[#allocation7 + $0x48] sm:$0xff]
    %v250 = vld [vmem:[#allocation7 + $0x50] sm:$0xff]
    %v251 = vld [vmem:[#allocation7 + $0x58] sm:$0xff]
    %v252 = vld [vmem:[#allocation7 + $0x60] sm:$0xff]
    %v253 = vld [vmem:[#allocation7 + $0x68] sm:$0xff]
    %v254 = vld [vmem:[#allocation7 + $0x70] sm:$0xff]
    %v255 = vld [vmem:[#allocation7 + $0x78] sm:$0xff]
    %v256 = vld [vmem:[%s8] sm:$0x1]
    %v258 = vperm.slane %v256, 0
    %260 = vmatpush.msra.mxu0 %v255
    %261 = vmatpush.msra.mxu0 %v254
    %262 = vmatpush.msra.mxu0 %v253
    %263 = vmatpush.msra.mxu0 %v252
    %264 = vmatpush.msra.mxu0 %v251
    %265 = vmatpush.msra.mxu0 %v250
    %266 = vmatpush.msra.mxu0 %v249
    %267 = vmatpush.msra.mxu0 %v248
    %268 = vmatpush.msra.mxu0 %v247
    %269 = vmatpush.msra.mxu0 %v246
    %270 = vmatpush.msra.mxu0 %v245
    %271 = vmatpush.msra.mxu0 %v244
    %272 = vmatpush.msra.mxu0 %v243
    %273 = vmatpush.msra.mxu0 %v242
    %274 = vmatpush.msra.mxu0 %v241
    %275 = vmatpush.msra.mxu0 %v240
    %276 = vmatmul.f32.gmra.mxu0 %v239
    %v277 = vpop.f32.mrf.mxu0
    %v278 = vadd.f32 %v258, %v277
    %279 = vdwg.mxu0
    %v280 = vmax.f32 %v278, 0.0
    %v281 = vld [vmem:[#allocation9] sm:$0xff]
    %v282 = vld [vmem:[#allocation9 + $0x8] sm:$0xff]
    %v283 = vld [vmem:[#allocation9 + $0x10] sm:$0xff]
    %v284 = vld [vmem:[#allocation9 + $0x18] sm:$0xff]
    %v285 = vld [vmem:[#allocation9 + $0x20] sm:$0xff]
    %v286 = vld [vmem:[#allocation9 + $0x28] sm:$0xff]
    %v287 = vld [vmem:[#allocation9 + $0x30] sm:$0xff]
    %v288 = vld [vmem:[#allocation9 + $0x38] sm:$0xff]
    %v289 = vld [vmem:[#allocation9 + $0x40] sm:$0xff]
    %v290 = vld [vmem:[#allocation9 + $0x48] sm:$0xff]
    %v291 = vld [vmem:[#allocation9 + $0x50] sm:$0xff]
    %v292 = vld [vmem:[#allocation9 + $0x58] sm:$0xff]
    %v293 = vld [vmem:[#allocation9 + $0x60] sm:$0xff]
    %v294 = vld [vmem:[#allocation9 + $0x68] sm:$0xff]
    %v295 = vld [vmem:[#allocation9 + $0x70] sm:$0xff]
    %v296 = vld [vmem:[#allocation9 + $0x78] sm:$0xff]
    %v297 = vld [vmem:[%s10] sm:$0x1]
    %v299 = vperm.slane %v297, 0
    %301 = vmatpush.msra.mxu0 %v296
    %302 = vmatpush.msra.mxu0 %v295
    %303 = vmatpush.msra.mxu0 %v294
    %304 = vmatpush.msra.mxu0 %v293
    %305 = vmatpush.msra.mxu0 %v292
    %306 = vmatpush.msra.mxu0 %v291
    %307 = vmatpush.msra.mxu0 %v290
    %308 = vmatpush.msra.mxu0 %v289
    %309 = vmatpush.msra.mxu0 %v288
    %310 = vmatpush.msra.mxu0 %v287
    %311 = vmatpush.msra.mxu0 %v286
    %312 = vmatpush.msra.mxu0 %v285
    %313 = vmatpush.msra.mxu0 %v284
    %314 = vmatpush.msra.mxu0 %v283
    %315 = vmatpush.msra.mxu0 %v282
    %316 = vmatpush.msra.mxu0 %v281
    %317 = vmatmul.f32.gmra.mxu0 %v280
    %v318 = vpop.f32.mrf.mxu0
    %v319 = vadd.f32 %v299, %v318
    %320 = vdwg.mxu0
    %v321 = vmax.f32 %v319, 0.0
    %322 = vst [vmem:[%s11] sm:$0xff] %v321
    // Predicated region
    $region66: #{cl_classifier_forward.1} parent=1 // pred_check
      _
    $region67: #{cl_classifier_forward.1} parent=1 // pred_check_branch
      %324 = sbr.rel (0) target = $region69
    $region68: #{cl_classifier_forward.1} parent=1 // pred_region
      _
    $region69: #{cl_classifier_forward.1} parent=1 // pred_fallthru
      _
    // Predicated region
    $region70: #{cl_classifier_forward.1} parent=1 // pred_check
      _
    $region71: #{cl_classifier_forward.1} parent=1 // pred_check_branch
      %326 = sbr.rel (0) target = $region73
    $region72: #{cl_classifier_forward.1} parent=1 // pred_region
      _
    $region73: #{cl_classifier_forward.1} parent=1 // pred_fallthru
      _
    %327 = vsyncpa [#allocation3], 1
    %328 = vsyncpa [#allocation5], 1
    %329 = vsyncpa [#allocation8], 1

</llo_original>
